<compile_context>
chip_gen: v6e
topology: v6e:2x2x1
jax: 0.10.0
libtpu: 0.0.40
codegen_flags: <defaults>
</compile_context>

<pallas_src>
import jax
import jax.numpy as jnp
from jax.experimental import pallas as pl
from jax.experimental.pallas import tpu as pltpu

LN_EPS = 1e-5
# Standard hard-concrete stretch limits used by L0 / edge-pruning codebases.
HC_GAMMA = -0.1
HC_ZETA = 1.1


def deterministic_z_from_log_alpha(log_alpha):
    # TODO(synk): exact deterministic_z_from_log_alpha source was not provided;
    # using the standard hard-concrete deterministic gate
    # clamp(sigmoid(log_alpha) * (zeta - gamma) + gamma, 0, 1). With
    # log_alpha ~ N(10, 0.01) this evaluates to ~1.0, matching module init.
    s = jax.nn.sigmoid(log_alpha)
    return jnp.clip(s * (HC_ZETA - HC_GAMMA) + HC_GAMMA, 0.0, 1.0)


def _make_kernel(writer_idx):
    WI = writer_idx  # static Python int (module-construction-time constant)

    def kernel(x_ref, gates_ref, g_ref, b_ref,
               wu_ref, bu_ref, wd_ref, bd_ref, out_ref):
        # x_ref     : (WI+1, TM, D)  writer slabs 0..WI of this M-tile (VMEM)
        # gates_ref : (1, W+1) SMEM  [0..W) read gates (already * read mask),
        #                            [W]    write (node) gate
        # g/b_ref   : (1, D)         LayerNorm gamma/beta
        # wu/bu     : (D, H), (1, H) up projection
        # wd/bd     : (H, D), (1, D) down projection
        # out_ref   : (1, TM, D)     the writer_idx slab of this M-tile (aliased)
        tm, d = x_ref.shape[1], x_ref.shape[2]
        w_total = gates_ref.shape[1] - 1

        # --- read-gather: x_z = sum_{w < writer_idx} x[w] * z[w]  ('wbsd,w->bsd')
        # Gates for w >= writer_idx are exactly 0, so the unrolled loop stops at
        # WI (WI is tiny, so scalar*tile FMAs on the VPU beat an MXU matmul with
        # 128-wide padding here).
        if WI == 0:
            x_z = jnp.zeros((tm, d), jnp.float32)
        else:
            x_z = x_ref[0].astype(jnp.float32) * gates_ref[0, 0]
            for w in range(1, WI):
                x_z = x_z + x_ref[w].astype(jnp.float32) * gates_ref[0, w]

        # --- input LayerNorm over D (D is unpadded, so stats use the true D) --
        mean = jnp.mean(x_z, axis=-1, keepdims=True)
        c = x_z - mean
        var = jnp.mean(c * c, axis=-1, keepdims=True)
        normed = c * jax.lax.rsqrt(var + LN_EPS)
        normed = normed * g_ref[...] + b_ref[...]            # (TM, D)

        # --- up projection + bias + ReLU --------------------------------------
        h = jnp.dot(normed, wu_ref[...], preferred_element_type=jnp.float32)
        h = jnp.maximum(h + bu_ref[...], 0.0)                # (TM, H)

        # --- down projection + bias -------------------------------------------
        y = jnp.dot(h, wd_ref[...], preferred_element_type=jnp.float32)
        y = y + bd_ref[...]                                  # (TM, D)

        # --- write: only the writer_idx slab changes; residual + gated output -
        zw = gates_ref[0, w_total]
        out_ref[0] = (x_ref[WI] + y * zw).astype(out_ref.dtype)

    return kernel


def _choose_tile_m(m, target):
    """Largest multiple of 8 <= target that divides m (or full m)."""
    if m <= target:
        return m
    t = (target // 8) * 8
    for tm in range(max(t, 8), 0, -8):
        if m % tm == 0:
            return tm
    return m


def erazr_mlp_forward(hidden_states, params, writer_idx, *, tm_target=256):
    """hidden_states: (W, B, S, D). Returns (residual, z_edges_sum, z_nodes_sum)."""
    W, B, S, D = hidden_states.shape
    H = params["up_proj"].shape[1]
    M = B * S
    WI = int(writer_idx)
    dt = hidden_states.dtype
    x = hidden_states.reshape(W, M, D)

    TM = _choose_tile_m(M, tm_target)
    grid = (M // TM,)

    # --- gates (tiny; computed in XLA glue) -----------------------------------
    m_read = deterministic_z_from_log_alpha(
        params["mlp_read_log_alphas"]).astype(jnp.float32)
    read_common_mask = (jnp.arange(W) < WI).astype(jnp.float32)
    z_read = m_read * read_common_mask                                   # (W,)
    z_edges_sum = jnp.sum(z_read)
    z_write = deterministic_z_from_log_alpha(
        params["mlp_write_log_alphas"]).astype(jnp.float32)              # ()
    gates = jnp.concatenate([z_read, z_write.reshape(1)]).reshape(1, W + 1)

    # --- cost estimate so XLA schedules around the custom call ---------------
    flops = int(2 * M * D * H * 2 + M * D * (WI + 8))
    bytes_accessed = int(4 * ((WI + 2) * M * D + 2 * D * H + 3 * D + H))
    cost = pl.CostEstimate(flops=flops, transcendentals=int(M),
                           bytes_accessed=bytes_accessed)

    # --- VMEM budget (lane/sublane padded, double-buffered) with headroom ----
    lane, sub = 128, 8
    pad = lambda n, k: ((n + k - 1) // k) * k
    blk_x = (WI + 1) * pad(TM, sub) * pad(D, lane) * 4
    blk_o = pad(TM, sub) * pad(D, lane) * 4
    blk_h = pad(TM, sub) * pad(H, lane) * 4
    w_bytes = (pad(D, sub) * pad(H, lane) + pad(H, sub) * pad(D, lane)
               + 3 * pad(D, lane) + pad(H, lane)) * 4
    need = 2 * (blk_x + blk_o) + 8 * blk_h + 2 * w_bytes
    vmem_limit = int(min(48 * 2**20, max(32 * 2**20, 2 * need)))

    out = pl.pallas_call(
        _make_kernel(WI),
        out_shape=jax.ShapeDtypeStruct((W, M, D), dt),
        grid=grid,
        in_specs=[
            # hidden states: only slabs 0..writer_idx are ever read
            pl.BlockSpec((WI + 1, TM, D), lambda i: (0, i, 0)),
            # packed scalar gates in SMEM
            pl.BlockSpec((1, W + 1), lambda i: (0, 0),
                         memory_space=pltpu.MemorySpace.SMEM),
            # LayerNorm / MLP params: constant index maps -> stay VMEM-resident
            pl.BlockSpec((1, D), lambda i: (0, 0)),
            pl.BlockSpec((1, D), lambda i: (0, 0)),
            pl.BlockSpec((D, H), lambda i: (0, 0)),
            pl.BlockSpec((1, H), lambda i: (0, 0)),
            pl.BlockSpec((H, D), lambda i: (0, 0)),
            pl.BlockSpec((1, D), lambda i: (0, 0)),
        ],
        # Only the writer_idx slab is written; all other slabs are preserved
        # through the input/output alias of operand 0 with output 0.
        out_specs=pl.BlockSpec((1, TM, D), lambda i: (WI, i, 0)),
        input_output_aliases={0: 0},
        compiler_params=pltpu.CompilerParams(
            dimension_semantics=("parallel",),
            vmem_limit_bytes=vmem_limit),
        cost_estimate=cost,
    )(
        x,
        gates,
        params["ln_weight"].reshape(1, D).astype(jnp.float32),
        params["ln_bias"].reshape(1, D).astype(jnp.float32),
        params["up_proj"].astype(jnp.float32),
        params["up_bias"].reshape(1, H).astype(jnp.float32),
        params["down_proj"].astype(jnp.float32),
        params["down_bias"].reshape(1, D).astype(jnp.float32),
    )
    residual = out.reshape(W, B, S, D)
    return residual, z_edges_sum, z_write


def erazr_mlp_reference(hidden_states, params, writer_idx):
    """Pure-JAX reference mirroring the PyTorch forward, for verification."""
    W = hidden_states.shape[0]
    dt = hidden_states.dtype
    m_read = deterministic_z_from_log_alpha(params["mlp_read_log_alphas"])
    read_common_mask = (jnp.arange(W) < writer_idx).astype(dt)
    z = m_read * read_common_mask
    x_z = jnp.einsum("wbsd,w->bsd", hidden_states, z)
    mean = jnp.mean(x_z, axis=-1, keepdims=True)
    var = jnp.mean((x_z - mean) ** 2, axis=-1, keepdims=True)
    x_z = (x_z - mean) * jax.lax.rsqrt(var + LN_EPS)
    x_z = x_z * params["ln_weight"] + params["ln_bias"]
    h = jnp.einsum("bsh,hk->bsk", x_z, params["up_proj"]) + params["up_bias"].reshape(1, 1, -1)
    h = jnp.maximum(h, 0.0)
    y = jnp.einsum("bsk,kh->bsh", h, params["down_proj"]) + params["down_bias"].reshape(1, 1, -1)
    zw = deterministic_z_from_log_alpha(params["mlp_write_log_alphas"])
    y = y * zw
    write_common_mask = (jnp.arange(W) == writer_idx).astype(dt)
    scat = jnp.einsum("ibsd,wi->wbsd", y[None], write_common_mask[:, None])
    return hidden_states + scat, jnp.sum(z), zw


if __name__ == "__main__":
    # Config (ErazrConfig defaults): model_size=41, num_layers=4, num_heads=1,
    # mlp_hidden_size=30  ->  num_writers = 2 + 4*(1+1) = 10
    D = 41          # model_size
    H = 30          # mlp_hidden_size
    W = 10          # num_writers
    B, S = 2, 8
    writer_idx = 5

    key = jax.random.PRNGKey(0)
    k_x, k_ra, k_wa, k_up, k_ub, k_dn, k_db = jax.random.split(key, 7)

    hidden_states = jax.random.normal(k_x, (W, B, S, D), dtype=jnp.float32)

    params = {
        # log alphas init: normal(mean=10, std=0.01) as in the module
        "mlp_read_log_alphas": 10.0 + 0.01 * jax.random.normal(k_ra, (W,), dtype=jnp.float32),
        "mlp_write_log_alphas": 10.0 + 0.01 * jax.random.normal(k_wa, (), dtype=jnp.float32),
        # nn.LayerNorm default init
        "ln_weight": jnp.ones((D,), dtype=jnp.float32),
        "ln_bias": jnp.zeros((D,), dtype=jnp.float32),
        # projections provided via load_proj in the original; synthesized here
        "up_proj": 0.1 * jax.random.normal(k_up, (D, H), dtype=jnp.float32),
        "up_bias": 0.1 * jax.random.normal(k_ub, (H,), dtype=jnp.float32),
        "down_proj": 0.1 * jax.random.normal(k_dn, (H, D), dtype=jnp.float32),
        "down_bias": 0.1 * jax.random.normal(k_db, (D,), dtype=jnp.float32),
    }

    # Reference first (defensive w.r.t. the aliased/donated kernel output).
    ref_res, ref_ze, ref_zn = erazr_mlp_reference(hidden_states, params, writer_idx)

    # tm_target=8 forces a multi-step grid (M=16 -> 2 tiles) so the pipelined /
    # aliased path is actually exercised at this toy size.
    res, ze, zn = erazr_mlp_forward(hidden_states, params, writer_idx, tm_target=8)
    jax.block_until_ready(res)

    assert jnp.allclose(res, ref_res, atol=1e-4, rtol=1e-4), "mismatch vs reference"
    assert jnp.allclose(ze, ref_ze, atol=1e-5)
    assert jnp.allclose(zn, ref_zn, atol=1e-5)

    print("KERNEL_OK")
</pallas_src>

<mosaic_0001>
module attributes {stable_mosaic.version = 11 : i64} {
  func.func @kernel(%arg0: i32, %arg1: memref<6x8x41xf32, #tpu.memory_space<vmem>>, %arg2: memref<1x11xf32, #tpu.memory_space<smem>>, %arg3: memref<1x41xf32, #tpu.memory_space<vmem>>, %arg4: memref<1x41xf32, #tpu.memory_space<vmem>>, %arg5: memref<41x30xf32, #tpu.memory_space<vmem>>, %arg6: memref<1x30xf32, #tpu.memory_space<vmem>>, %arg7: memref<30x41xf32, #tpu.memory_space<vmem>>, %arg8: memref<1x41xf32, #tpu.memory_space<vmem>>, %arg9: memref<1x8x41xf32, #tpu.memory_space<vmem>>) attributes {dimension_semantics = [#tpu.dimension_semantics<parallel>], iteration_bounds = array<i64: 2>, scalar_prefetch = 0 : i64, scratch_operands = 0 : i64, tpu.core_type = #tpu.core_type<tc>, window_params = [{transform_indices = @transform_0, window_bounds = array<i64: 6, 8, 41>}, {transform_indices = @transform_1, window_bounds = array<i64: 1, 11>}, {pipeline_mode = #tpu.pipeline_mode<synchronous>, transform_indices = @transform_2, window_bounds = array<i64: 1, 41>}, {pipeline_mode = #tpu.pipeline_mode<synchronous>, transform_indices = @transform_3, window_bounds = array<i64: 1, 41>}, {pipeline_mode = #tpu.pipeline_mode<synchronous>, transform_indices = @transform_4, window_bounds = array<i64: 41, 30>}, {pipeline_mode = #tpu.pipeline_mode<synchronous>, transform_indices = @transform_5, window_bounds = array<i64: 1, 30>}, {pipeline_mode = #tpu.pipeline_mode<synchronous>, transform_indices = @transform_6, window_bounds = array<i64: 30, 41>}, {pipeline_mode = #tpu.pipeline_mode<synchronous>, transform_indices = @transform_7, window_bounds = array<i64: 1, 41>}, {transform_indices = @transform_8, window_bounds = array<i64: 1, 8, 41>}]} {
    %c0 = arith.constant 0 : index
    %c0_0 = arith.constant 0 : index
    %c0_1 = arith.constant 0 : index
    %0 = vector.load %arg1[%c0, %c0_0, %c0_1] : memref<6x8x41xf32, #tpu.memory_space<vmem>>, vector<1x8x41xf32>
    %1 = vector.shape_cast %0 : vector<1x8x41xf32> to vector<8x41xf32>
    %c0_2 = arith.constant 0 : index
    %c0_3 = arith.constant 0 : index
    %2 = memref.load %arg2[%c0_2, %c0_3] : memref<1x11xf32, #tpu.memory_space<smem>>
    %3 = vector.broadcast %2 : f32 to vector<8x41xf32>
    %4 = arith.mulf %1, %3 : vector<8x41xf32>
    %c1 = arith.constant 1 : index
    %c0_4 = arith.constant 0 : index
    %c0_5 = arith.constant 0 : index
    %5 = vector.load %arg1[%c1, %c0_4, %c0_5] : memref<6x8x41xf32, #tpu.memory_space<vmem>>, vector<1x8x41xf32>
    %6 = vector.shape_cast %5 : vector<1x8x41xf32> to vector<8x41xf32>
    %c0_6 = arith.constant 0 : index
    %c1_7 = arith.constant 1 : index
    %7 = memref.load %arg2[%c0_6, %c1_7] : memref<1x11xf32, #tpu.memory_space<smem>>
    %8 = vector.broadcast %7 : f32 to vector<8x41xf32>
    %9 = arith.mulf %6, %8 : vector<8x41xf32>
    %10 = arith.addf %4, %9 : vector<8x41xf32>
    %c2 = arith.constant 2 : index
    %c0_8 = arith.constant 0 : index
    %c0_9 = arith.constant 0 : index
    %11 = vector.load %arg1[%c2, %c0_8, %c0_9] : memref<6x8x41xf32, #tpu.memory_space<vmem>>, vector<1x8x41xf32>
    %12 = vector.shape_cast %11 : vector<1x8x41xf32> to vector<8x41xf32>
    %c0_10 = arith.constant 0 : index
    %c2_11 = arith.constant 2 : index
    %13 = memref.load %arg2[%c0_10, %c2_11] : memref<1x11xf32, #tpu.memory_space<smem>>
    %14 = vector.broadcast %13 : f32 to vector<8x41xf32>
    %15 = arith.mulf %12, %14 : vector<8x41xf32>
    %16 = arith.addf %10, %15 : vector<8x41xf32>
    %c3 = arith.constant 3 : index
    %c0_12 = arith.constant 0 : index
    %c0_13 = arith.constant 0 : index
    %17 = vector.load %arg1[%c3, %c0_12, %c0_13] : memref<6x8x41xf32, #tpu.memory_space<vmem>>, vector<1x8x41xf32>
    %18 = vector.shape_cast %17 : vector<1x8x41xf32> to vector<8x41xf32>
    %c0_14 = arith.constant 0 : index
    %c3_15 = arith.constant 3 : index
    %19 = memref.load %arg2[%c0_14, %c3_15] : memref<1x11xf32, #tpu.memory_space<smem>>
    %20 = vector.broadcast %19 : f32 to vector<8x41xf32>
    %21 = arith.mulf %18, %20 : vector<8x41xf32>
    %22 = arith.addf %16, %21 : vector<8x41xf32>
    %c4 = arith.constant 4 : index
    %c0_16 = arith.constant 0 : index
    %c0_17 = arith.constant 0 : index
    %23 = vector.load %arg1[%c4, %c0_16, %c0_17] : memref<6x8x41xf32, #tpu.memory_space<vmem>>, vector<1x8x41xf32>
    %24 = vector.shape_cast %23 : vector<1x8x41xf32> to vector<8x41xf32>
    %c0_18 = arith.constant 0 : index
    %c4_19 = arith.constant 4 : index
    %25 = memref.load %arg2[%c0_18, %c4_19] : memref<1x11xf32, #tpu.memory_space<smem>>
    %26 = vector.broadcast %25 : f32 to vector<8x41xf32>
    %27 = arith.mulf %24, %26 : vector<8x41xf32>
    %28 = arith.addf %22, %27 : vector<8x41xf32>
    %cst = arith.constant dense<0.000000e+00> : vector<8xf32>
    %29 = vector.multi_reduction <add>, %28, %cst [1] : vector<8x41xf32> to vector<8xf32>
    %30 = vector.shape_cast %29 : vector<8xf32> to vector<8x1xf32>
    %cst_20 = arith.constant 4.100000e+01 : f32
    %31 = vector.broadcast %cst_20 : f32 to vector<8x1xf32>
    %32 = arith.divf %30, %31 : vector<8x1xf32>
    %33 = vector.broadcast %32 : vector<8x1xf32> to vector<8x41xf32>
    %34 = arith.subf %28, %33 : vector<8x41xf32>
    %35 = arith.mulf %34, %34 : vector<8x41xf32>
    %cst_21 = arith.constant dense<0.000000e+00> : vector<8xf32>
    %36 = vector.multi_reduction <add>, %35, %cst_21 [1] : vector<8x41xf32> to vector<8xf32>
    %37 = vector.shape_cast %36 : vector<8xf32> to vector<8x1xf32>
    %cst_22 = arith.constant 4.100000e+01 : f32
    %38 = vector.broadcast %cst_22 : f32 to vector<8x1xf32>
    %39 = arith.divf %37, %38 : vector<8x1xf32>
    %cst_23 = arith.constant 9.99999974E-6 : f32
    %40 = vector.broadcast %cst_23 : f32 to vector<8x1xf32>
    %41 = arith.addf %39, %40 : vector<8x1xf32>
    %42 = math.rsqrt %41 : vector<8x1xf32>
    %43 = vector.broadcast %42 : vector<8x1xf32> to vector<8x41xf32>
    %44 = arith.mulf %34, %43 : vector<8x41xf32>
    %c0_24 = arith.constant 0 : index
    %c0_25 = arith.constant 0 : index
    %45 = vector.load %arg3[%c0_24, %c0_25] : memref<1x41xf32, #tpu.memory_space<vmem>>, vector<1x41xf32>
    %46 = vector.broadcast %45 : vector<1x41xf32> to vector<8x41xf32>
    %47 = arith.mulf %44, %46 : vector<8x41xf32>
    %c0_26 = arith.constant 0 : index
    %c0_27 = arith.constant 0 : index
    %48 = vector.load %arg4[%c0_26, %c0_27] : memref<1x41xf32, #tpu.memory_space<vmem>>, vector<1x41xf32>
    %49 = vector.broadcast %48 : vector<1x41xf32> to vector<8x41xf32>
    %50 = arith.addf %47, %49 : vector<8x41xf32>
    %c0_28 = arith.constant 0 : index
    %c0_29 = arith.constant 0 : index
    %51 = vector.load %arg5[%c0_28, %c0_29] : memref<41x30xf32, #tpu.memory_space<vmem>>, vector<41x30xf32>
    %cst_30 = arith.constant dense<0.000000e+00> : vector<8x30xf32>
    %52 = tpu.matmul %50, %51, %cst_30 {dimension_numbers = #tpu.dot_dimension_numbers<[1], [0], [0], [1], [0, 0, 1, 1], [], []>} : vector<8x41xf32>, vector<41x30xf32>, vector<8x30xf32> -> vector<8x30xf32>
    %c0_31 = arith.constant 0 : index
    %c0_32 = arith.constant 0 : index
    %53 = vector.load %arg6[%c0_31, %c0_32] : memref<1x30xf32, #tpu.memory_space<vmem>>, vector<1x30xf32>
    %54 = vector.broadcast %53 : vector<1x30xf32> to vector<8x30xf32>
    %55 = arith.addf %52, %54 : vector<8x30xf32>
    %cst_33 = arith.constant 0.000000e+00 : f32
    %56 = vector.broadcast %cst_33 : f32 to vector<8x30xf32>
    %57 = arith.maximumf %55, %56 : vector<8x30xf32>
    %c0_34 = arith.constant 0 : index
    %c0_35 = arith.constant 0 : index
    %58 = vector.load %arg7[%c0_34, %c0_35] : memref<30x41xf32, #tpu.memory_space<vmem>>, vector<30x41xf32>
    %cst_36 = arith.constant dense<0.000000e+00> : vector<8x41xf32>
    %59 = tpu.matmul %57, %58, %cst_36 {dimension_numbers = #tpu.dot_dimension_numbers<[1], [0], [0], [1], [0, 0, 1, 1], [], []>} : vector<8x30xf32>, vector<30x41xf32>, vector<8x41xf32> -> vector<8x41xf32>
    %c0_37 = arith.constant 0 : index
    %c0_38 = arith.constant 0 : index
    %60 = vector.load %arg8[%c0_37, %c0_38] : memref<1x41xf32, #tpu.memory_space<vmem>>, vector<1x41xf32>
    %61 = vector.broadcast %60 : vector<1x41xf32> to vector<8x41xf32>
    %62 = arith.addf %59, %61 : vector<8x41xf32>
    %c0_39 = arith.constant 0 : index
    %c10 = arith.constant 10 : index
    %63 = memref.load %arg2[%c0_39, %c10] : memref<1x11xf32, #tpu.memory_space<smem>>
    %c5 = arith.constant 5 : index
    %c0_40 = arith.constant 0 : index
    %c0_41 = arith.constant 0 : index
    %64 = vector.load %arg1[%c5, %c0_40, %c0_41] : memref<6x8x41xf32, #tpu.memory_space<vmem>>, vector<1x8x41xf32>
    %65 = vector.shape_cast %64 : vector<1x8x41xf32> to vector<8x41xf32>
    %66 = vector.broadcast %63 : f32 to vector<8x41xf32>
    %67 = arith.mulf %62, %66 : vector<8x41xf32>
    %68 = arith.addf %65, %67 : vector<8x41xf32>
    %c0_42 = arith.constant 0 : index
    %c0_43 = arith.constant 0 : index
    %c0_44 = arith.constant 0 : index
    %69 = vector.load %arg9[%c0_42, %c0_43, %c0_44] : memref<1x8x41xf32, #tpu.memory_space<vmem>>, vector<1x8x41xf32>
    %70 = vector.shape_cast %69 : vector<1x8x41xf32> to vector<8x41xf32>
    %71 = vector.shape_cast %68 : vector<8x41xf32> to vector<1x8x41xf32>
    tpu.vector_store %arg9[%c0_42, %c0_43, %c0_44], %71 {strides = array<i32>} : memref<1x8x41xf32, #tpu.memory_space<vmem>>, vector<1x8x41xf32>,
    return
  }
  func.func @transform_0(%arg0: i32) -> (i32, i32, i32) {
    %c0_i32 = arith.constant 0 : i32
    %c0_i32_0 = arith.constant 0 : i32
    %c0_i32_1 = arith.constant 0 : i32
    return %c0_i32, %arg0, %c0_i32_0 : i32, i32, i32
  }
  func.func @transform_1(%arg0: i32) -> (i32, i32) {
    %c0_i32 = arith.constant 0 : i32
    %c0_i32_0 = arith.constant 0 : i32
    %c0_i32_1 = arith.constant 0 : i32
    return %c0_i32, %c0_i32_0 : i32, i32
  }
  func.func @transform_2(%arg0: i32) -> (i32, i32) {
    %c0_i32 = arith.constant 0 : i32
    %c0_i32_0 = arith.constant 0 : i32
    %c0_i32_1 = arith.constant 0 : i32
    return %c0_i32, %c0_i32_0 : i32, i32
  }
  func.func @transform_3(%arg0: i32) -> (i32, i32) {
    %c0_i32 = arith.constant 0 : i32
    %c0_i32_0 = arith.constant 0 : i32
    %c0_i32_1 = arith.constant 0 : i32
    return %c0_i32, %c0_i32_0 : i32, i32
  }
  func.func @transform_4(%arg0: i32) -> (i32, i32) {
    %c0_i32 = arith.constant 0 : i32
    %c0_i32_0 = arith.constant 0 : i32
    %c0_i32_1 = arith.constant 0 : i32
    return %c0_i32, %c0_i32_0 : i32, i32
  }
  func.func @transform_5(%arg0: i32) -> (i32, i32) {
    %c0_i32 = arith.constant 0 : i32
    %c0_i32_0 = arith.constant 0 : i32
    %c0_i32_1 = arith.constant 0 : i32
    return %c0_i32, %c0_i32_0 : i32, i32
  }
  func.func @transform_6(%arg0: i32) -> (i32, i32) {
    %c0_i32 = arith.constant 0 : i32
    %c0_i32_0 = arith.constant 0 : i32
    %c0_i32_1 = arith.constant 0 : i32
    return %c0_i32, %c0_i32_0 : i32, i32
  }
  func.func @transform_7(%arg0: i32) -> (i32, i32) {
    %c0_i32 = arith.constant 0 : i32
    %c0_i32_0 = arith.constant 0 : i32
    %c0_i32_1 = arith.constant 0 : i32
    return %c0_i32, %c0_i32_0 : i32, i32
  }
  func.func @transform_8(%arg0: i32) -> (i32, i32, i32) {
    %c5_i32 = arith.constant 5 : i32
    %c0_i32 = arith.constant 0 : i32
    %c0_i32_0 = arith.constant 0 : i32
    return %c5_i32, %arg0, %c0_i32 : i32, i32, i32
  }
}

</mosaic_0001>

<llo_original>
// kernel: tpu_custom_call.1
$region0: #{tpu_custom_call.1}
  #allocation0 [shape = 'u32[]', space=smem, size = 0x4, offset = 0x4, fixed_abs, tag = 'smem constant byte address 0x4 - core index']
  #allocation1 [shape = 'u32[144,128]{1,0:T(1,128)}', space=vmem, size = 0x12000, scoped, tag = 'internal scratch']
  %s0 = inlined_call_operand.hbm [shape: f32[10,16,41], index: 0, kind: input, shape index: {}, may-alias: {0,8}]
  %s1 = inlined_call_operand.vmem [shape: f32[1,11], index: 1, kind: input, shape index: {}]
  %s2 = inlined_call_operand.vmem [shape: f32[1,41], index: 2, kind: input, shape index: {}]
  %s3 = inlined_call_operand.vmem [shape: f32[1,41], index: 3, kind: input, shape index: {}]
  %s4 = inlined_call_operand.vmem [shape: f32[41,30], index: 4, kind: input, shape index: {}]
  %s5 = inlined_call_operand.vmem [shape: f32[1,30], index: 5, kind: input, shape index: {}]
  %s6 = inlined_call_operand.vmem [shape: f32[30,41], index: 6, kind: input, shape index: {}]
  %s7 = inlined_call_operand.vmem [shape: f32[1,41], index: 7, kind: input, shape index: {}]
  %s8 = inlined_call_operand.hbm [shape: f32[10,16,41], index: 8, kind: output, shape index: {}, may-alias: {0,8}]
  %s9 = sld [smem:[#allocation0]]
  $region73: #{tpu_custom_call.1} parent=0
    _
  %s11 = ssub.s32 1, %s9
  %s12 = scalar_select 0, %s11, %s9
  $region1: #{tpu_custom_call.1} parent=0
    #allocation2 [shape = 'u8[49152]{0}', space=vmem, size = 0xc000, scoped, tag = 'input window, operand 0']
    #allocation3 [shape = 's32[2]{0}', space=sflag, size = 0x8, scoped, tag = 'scoped memory for tpu_custom_call.1']
    #allocation4 [shape = 's32[2]{0}', space=sflag, size = 0x8, scoped, tag = 'scoped memory for tpu_custom_call.1']
    #allocation5 [shape = 's32[2]{0}', space=sflag, size = 0x8, scoped, tag = 'scoped memory for tpu_custom_call.1']
    #allocation6 [shape = 'u8[512]{0}', space=smem, size = 0x200, scoped, tag = 'input window, operand 1, single buffered']
    #allocation7 [shape = 'u8[8192]{0}', space=vmem, size = 0x2000, scoped, tag = 'output window, operand 0']
    %13 = vsyncpa [#allocation3], 0
    %s14 = scalar_lea.sflag [#allocation3], 1
    %15 = vsyncpa %s14, 0
    %16 = vsyncpa [#allocation5], 0
    %17 = vsyncpa [#allocation4], 0
    %s18 = scalar_lea.sflag [#allocation4], 1
    %19 = vsyncpa %s18, 0
    loop: start=0, step=1, limit=4
    $region2: #{tpu_custom_call.1} parent=1 // loop_pre_header
      _
    $region3: #{tpu_custom_call.1} parent=1 // loop_header
      %s21 = sphi 0, %s25
      %p22 = scmp.ge.s32.totalorder %s21, 4
      %s31 = sphi 0, %s33
      %s34 = sphi 0, %s31
      %s35 = sphi 0, %s34
      %s51 = sphi 0, %s35
      %s55 = sphi 0, %s55
      %s57 = sphi 0, %s55
      %s58 = sphi 0, %s57
      %s72 = sphi 0, %s58
      %s76 = sphi 0, %s76
      %s78 = sphi 0, %s76
      %s79 = sphi 0, %s78
      %s93 = sphi 0, %s79
      %s97 = sphi 0, %s97
      %s99 = sphi 0, %s97
      %s100 = sphi 0, %s99
      %s114 = sphi 0, %s100
      %s118 = sphi 0, %s118
      %s120 = sphi 0, %s118
      %s121 = sphi 0, %s120
      %s135 = sphi 0, %s121
      %s139 = sphi 0, %s139
      %s141 = sphi 0, %s139
      %s142 = sphi 0, %s141
      %s156 = sphi 0, %s142
      %s160 = sphi 0, %s160
      %s162 = sphi 0, %s160
      %s163 = sphi 0, %s162
      %s177 = sphi 0, %s163
      %s181 = sphi 0, %s181
      %s183 = sphi 0, %s181
      %s184 = sphi 0, %s183
      %s198 = sphi 0, %s184
      %s204 = sphi 0, %s206
      %s207 = sphi 0, %s204
      %s208 = sphi 0, %s207
      %s224 = sphi 0, %s208
    $region4: #{tpu_custom_call.1} parent=1 // loop_header_branch
      %24 = sbr.rel (%p22) target = $region8
    $region5: #{tpu_custom_call.1} parent=1 // loop_body
      %s26 = ssub.s32 %s21, 1
      %s27 = ssub.s32 %s21, 2
      %s28 = sadd.s32 %s21, 1
      %s29 = ssub.s32 %s21, %s28
      %p30 = scmp.eq.s32.totalorder %s29, 0
      %s32 = sadd.s32 %s31, 1
      %s33 = scalar_select %p30, %s31, %s32
      %p36 = pneg %p30
      %p37 = scmp.eq.s32.totalorder %s21, 1
      %p38 = por %p36, %p37
      %p39 = scmp.ne.s32.totalorder %s31, %s34
      %p40 = scmp.eq.s32.totalorder %s21, 0
      %p41 = por %p39, %p40
      %p42 = scmp.ne.s32.totalorder %s31, %s34
      %p43 = scmp.eq.s32.totalorder %s26, 1
      %p44 = por %p42, %p43
      %p45 = scmp.ne.s32.totalorder %s34, %s35
      %p46 = scmp.eq.s32.totalorder %s26, 0
      %p47 = por %p45, %p46
      %p48 = scmp.ne.s32.totalorder %s34, %s35
      %p49 = scmp.eq.s32.totalorder %s27, 1
      %p50 = por %p48, %p49
      %p52 = scmp.ne.s32.totalorder %s35, %s51
      %p53 = scmp.eq.s32.totalorder %s27, 0
      %p54 = por %p52, %p53
      %s56 = sadd.s32 %s55, 1
      %p59 = scmp.eq.s32.totalorder %s21, 1
      %p60 = scmp.ne.s32.totalorder %s55, %s57
      %p61 = scmp.eq.s32.totalorder %s21, 0
      %p62 = por %p60, %p61
      %p63 = scmp.ne.s32.totalorder %s55, %s57
      %p64 = scmp.eq.s32.totalorder %s26, 1
      %p65 = por %p63, %p64
      %p66 = scmp.ne.s32.totalorder %s57, %s58
      %p67 = scmp.eq.s32.totalorder %s26, 0
      %p68 = por %p66, %p67
      %p69 = scmp.ne.s32.totalorder %s57, %s58
      %p70 = scmp.eq.s32.totalorder %s27, 1
      %p71 = por %p69, %p70
      %p73 = scmp.ne.s32.totalorder %s58, %s72
      %p74 = scmp.eq.s32.totalorder %s27, 0
      %p75 = por %p73, %p74
      %s77 = sadd.s32 %s76, 1
      %p80 = scmp.eq.s32.totalorder %s21, 1
      %p81 = scmp.ne.s32.totalorder %s76, %s78
      %p82 = scmp.eq.s32.totalorder %s21, 0
      %p83 = por %p81, %p82
      %p84 = scmp.ne.s32.totalorder %s76, %s78
      %p85 = scmp.eq.s32.totalorder %s26, 1
      %p86 = por %p84, %p85
      %p87 = scmp.ne.s32.totalorder %s78, %s79
      %p88 = scmp.eq.s32.totalorder %s26, 0
      %p89 = por %p87, %p88
      %p90 = scmp.ne.s32.totalorder %s78, %s79
      %p91 = scmp.eq.s32.totalorder %s27, 1
      %p92 = por %p90, %p91
      %p94 = scmp.ne.s32.totalorder %s79, %s93
      %p95 = scmp.eq.s32.totalorder %s27, 0
      %p96 = por %p94, %p95
      %s98 = sadd.s32 %s97, 1
      %p101 = scmp.eq.s32.totalorder %s21, 1
      %p102 = scmp.ne.s32.totalorder %s97, %s99
      %p103 = scmp.eq.s32.totalorder %s21, 0
      %p104 = por %p102, %p103
      %p105 = scmp.ne.s32.totalorder %s97, %s99
      %p106 = scmp.eq.s32.totalorder %s26, 1
      %p107 = por %p105, %p106
      %p108 = scmp.ne.s32.totalorder %s99, %s100
      %p109 = scmp.eq.s32.totalorder %s26, 0
      %p110 = por %p108, %p109
      %p111 = scmp.ne.s32.totalorder %s99, %s100
      %p112 = scmp.eq.s32.totalorder %s27, 1
      %p113 = por %p111, %p112
      %p115 = scmp.ne.s32.totalorder %s100, %s114
      %p116 = scmp.eq.s32.totalorder %s27, 0
      %p117 = por %p115, %p116
      %s119 = sadd.s32 %s118, 1
      %p122 = scmp.eq.s32.totalorder %s21, 1
      %p123 = scmp.ne.s32.totalorder %s118, %s120
      %p124 = scmp.eq.s32.totalorder %s21, 0
      %p125 = por %p123, %p124
      %p126 = scmp.ne.s32.totalorder %s118, %s120
      %p127 = scmp.eq.s32.totalorder %s26, 1
      %p128 = por %p126, %p127
      %p129 = scmp.ne.s32.totalorder %s120, %s121
      %p130 = scmp.eq.s32.totalorder %s26, 0
      %p131 = por %p129, %p130
      %p132 = scmp.ne.s32.totalorder %s120, %s121
      %p133 = scmp.eq.s32.totalorder %s27, 1
      %p134 = por %p132, %p133
      %p136 = scmp.ne.s32.totalorder %s121, %s135
      %p137 = scmp.eq.s32.totalorder %s27, 0
      %p138 = por %p136, %p137
      %s140 = sadd.s32 %s139, 1
      %p143 = scmp.eq.s32.totalorder %s21, 1
      %p144 = scmp.ne.s32.totalorder %s139, %s141
      %p145 = scmp.eq.s32.totalorder %s21, 0
      %p146 = por %p144, %p145
      %p147 = scmp.ne.s32.totalorder %s139, %s141
      %p148 = scmp.eq.s32.totalorder %s26, 1
      %p149 = por %p147, %p148
      %p150 = scmp.ne.s32.totalorder %s141, %s142
      %p151 = scmp.eq.s32.totalorder %s26, 0
      %p152 = por %p150, %p151
      %p153 = scmp.ne.s32.totalorder %s141, %s142
      %p154 = scmp.eq.s32.totalorder %s27, 1
      %p155 = por %p153, %p154
      %p157 = scmp.ne.s32.totalorder %s142, %s156
      %p158 = scmp.eq.s32.totalorder %s27, 0
      %p159 = por %p157, %p158
      %s161 = sadd.s32 %s160, 1
      %p164 = scmp.eq.s32.totalorder %s21, 1
      %p165 = scmp.ne.s32.totalorder %s160, %s162
      %p166 = scmp.eq.s32.totalorder %s21, 0
      %p167 = por %p165, %p166
      %p168 = scmp.ne.s32.totalorder %s160, %s162
      %p169 = scmp.eq.s32.totalorder %s26, 1
      %p170 = por %p168, %p169
      %p171 = scmp.ne.s32.totalorder %s162, %s163
      %p172 = scmp.eq.s32.totalorder %s26, 0
      %p173 = por %p171, %p172
      %p174 = scmp.ne.s32.totalorder %s162, %s163
      %p175 = scmp.eq.s32.totalorder %s27, 1
      %p176 = por %p174, %p175
      %p178 = scmp.ne.s32.totalorder %s163, %s177
      %p179 = scmp.eq.s32.totalorder %s27, 0
      %p180 = por %p178, %p179
      %s182 = sadd.s32 %s181, 1
      %p185 = scmp.eq.s32.totalorder %s21, 1
      %p186 = scmp.ne.s32.totalorder %s181, %s183
      %p187 = scmp.eq.s32.totalorder %s21, 0
      %p188 = por %p186, %p187
      %p189 = scmp.ne.s32.totalorder %s181, %s183
      %p190 = scmp.eq.s32.totalorder %s26, 1
      %p191 = por %p189, %p190
      %p192 = scmp.ne.s32.totalorder %s183, %s184
      %p193 = scmp.eq.s32.totalorder %s26, 0
      %p194 = por %p192, %p193
      %p195 = scmp.ne.s32.totalorder %s183, %s184
      %p196 = scmp.eq.s32.totalorder %s27, 1
      %p197 = por %p195, %p196
      %p199 = scmp.ne.s32.totalorder %s184, %s198
      %p200 = scmp.eq.s32.totalorder %s27, 0
      %p201 = por %p199, %p200
      %s202 = ssub.s32 %s21, %s28
      %p203 = scmp.eq.s32.totalorder %s202, 0
      %s205 = sadd.s32 %s204, 1
      %s206 = scalar_select %p203, %s204, %s205
      %p209 = pneg %p203
      %p210 = scmp.eq.s32.totalorder %s21, 1
      %p211 = por %p209, %p210
      %p212 = scmp.ne.s32.totalorder %s204, %s207
      %p213 = scmp.eq.s32.totalorder %s21, 0
      %p214 = por %p212, %p213
      %p215 = scmp.ne.s32.totalorder %s204, %s207
      %p216 = scmp.eq.s32.totalorder %s26, 1
      %p217 = por %p215, %p216
      %p218 = scmp.ne.s32.totalorder %s207, %s208
      %p219 = scmp.eq.s32.totalorder %s26, 0
      %p220 = por %p218, %p219
      %p221 = scmp.ne.s32.totalorder %s207, %s208
      %p222 = scmp.eq.s32.totalorder %s27, 1
      %p223 = por %p221, %p222
      %p225 = scmp.ne.s32.totalorder %s208, %s224
      %p226 = scmp.eq.s32.totalorder %s27, 0
      %p227 = por %p225, %p226
      %p228 = scmp.le.s32.totalorder 1, %s21
      %p229 = scmp.lt.s32.totalorder %s21, 3
      %p230 = pnand %p228, %p229
      %p231 = pneg %p230
      // Predicated region
      $region9: #{tpu_custom_call.1} parent=5 // pred_check
        _
      $region10: #{tpu_custom_call.1} parent=5 // pred_check_branch
        %233 = sbr.rel (%p230) target = $region12
      $region11: #{tpu_custom_call.1} parent=5 // pred_region
        %s234 = ssub.s32 %s21, 1
        // Predicated region
        $region13: #{tpu_custom_call.1} parent=11 // pred_check
          %p235 = pneg %p68
        $region14: #{tpu_custom_call.1} parent=11 // pred_check_branch
          %237 = sbr.rel (%p235) target = $region16
        $region15: #{tpu_custom_call.1} parent=11 // pred_region
          %s239 = ssub.s32 16, 16
          %240 = vsyncadd [#allocation5], %s239
          %s242 = sshll.u32 %s1, 4
          %s243 = int_to_ptr.vmem [resolvable:$true] %s242
          %245 = dma.vmem_to_smem %s243, 16, [#allocation6], [#allocation5]
        $region16: #{tpu_custom_call.1} parent=11 // pred_fallthru
          _
        // Predicated region
        $region17: #{tpu_custom_call.1} parent=11 // pred_check
          %p246 = pneg %p89
        $region18: #{tpu_custom_call.1} parent=11 // pred_check_branch
          %248 = sbr.rel (%p246) target = $region20
        $region19: #{tpu_custom_call.1} parent=11 // pred_region
          _
        $region20: #{tpu_custom_call.1} parent=11 // pred_fallthru
          _
        // Predicated region
        $region21: #{tpu_custom_call.1} parent=11 // pred_check
          %p249 = pneg %p110
        $region22: #{tpu_custom_call.1} parent=11 // pred_check_branch
          %251 = sbr.rel (%p249) target = $region24
        $region23: #{tpu_custom_call.1} parent=11 // pred_region
          _
        $region24: #{tpu_custom_call.1} parent=11 // pred_fallthru
          _
        // Predicated region
        $region25: #{tpu_custom_call.1} parent=11 // pred_check
          %p252 = pneg %p131
        $region26: #{tpu_custom_call.1} parent=11 // pred_check_branch
          %254 = sbr.rel (%p252) target = $region28
        $region27: #{tpu_custom_call.1} parent=11 // pred_region
          _
        $region28: #{tpu_custom_call.1} parent=11 // pred_fallthru
          _
        // Predicated region
        $region29: #{tpu_custom_call.1} parent=11 // pred_check
          %p255 = pneg %p152
        $region30: #{tpu_custom_call.1} parent=11 // pred_check_branch
          %257 = sbr.rel (%p255) target = $region32
        $region31: #{tpu_custom_call.1} parent=11 // pred_region
          _
        $region32: #{tpu_custom_call.1} parent=11 // pred_fallthru
          _
        // Predicated region
        $region33: #{tpu_custom_call.1} parent=11 // pred_check
          %p258 = pneg %p173
        $region34: #{tpu_custom_call.1} parent=11 // pred_check_branch
          %260 = sbr.rel (%p258) target = $region36
        $region35: #{tpu_custom_call.1} parent=11 // pred_region
          _
        $region36: #{tpu_custom_call.1} parent=11 // pred_fallthru
          _
        // Predicated region
        $region37: #{tpu_custom_call.1} parent=11 // pred_check
          %p261 = pneg %p194
        $region38: #{tpu_custom_call.1} parent=11 // pred_check_branch
          %263 = sbr.rel (%p261) target = $region40
        $region39: #{tpu_custom_call.1} parent=11 // pred_region
          _
        $region40: #{tpu_custom_call.1} parent=11 // pred_fallthru
          _
      $region12: #{tpu_custom_call.1} parent=5 // pred_fallthru
        _
      %p264 = scmp.lt.s32.totalorder %s21, 2
      // Predicated region
      $region41: #{tpu_custom_call.1} parent=5 // pred_check
        %p265 = pneg %p264
      $region42: #{tpu_custom_call.1} parent=5 // pred_check_branch
        %267 = sbr.rel (%p265) target = $region44
      $region43: #{tpu_custom_call.1} parent=5 // pred_region
        // Predicated region
        $region45: #{tpu_custom_call.1} parent=43 // pred_check
          %p268 = pneg %p41
        $region46: #{tpu_custom_call.1} parent=43 // pred_check_branch
          %270 = sbr.rel (%p268) target = $region48
        $region47: #{tpu_custom_call.1} parent=43 // pred_region
          %s271 = sand.u32 %s31, 1
          %s272 = scalar_lea.sflag [#allocation3], %s271
          %s273 = sand.u32 %s31, 1
          %s274 = smul.addr %s273, 48
          %s275 = scalar_lea.vmem [#allocation2], %s274
          %s277 = ssub.s32 768, 768
          %278 = vsyncadd %s272, %s277
          %s279 = smul.addr %s21, 128
          %s280 = scalar_lea.hbm %s0, %s279
          %s281 = sshll.u32 %s275, 4
          %s282 = int_to_ptr.vmem [resolvable:$true] %s281
          %287 = dma.hbm_to_vmem [thread:$0]  %s280, 768, %s282, %s272, 256, 128, 8
        $region48: #{tpu_custom_call.1} parent=43 // pred_fallthru
          _
      $region44: #{tpu_custom_call.1} parent=5 // pred_fallthru
        _
      %p288 = scmp.le.s32.totalorder 1, %s21
      %p289 = scmp.lt.s32.totalorder %s21, 3
      %p290 = pnand %p288, %p289
      %p291 = pneg %p290
      // Predicated region
      $region49: #{tpu_custom_call.1} parent=5 // pred_check
        _
      $region50: #{tpu_custom_call.1} parent=5 // pred_check_branch
        %293 = sbr.rel (%p290) target = $region52
      $region51: #{tpu_custom_call.1} parent=5 // pred_region
        %s294 = ssub.s32 %s21, 1
        %s295 = sand.u32 %s34, 1
        %s296 = scalar_lea.sflag [#allocation3], %s295
        %s297 = sand.u32 %s34, 1
        %s298 = smul.addr %s297, 48
        %s299 = scalar_lea.vmem [#allocation2], %s298
        // Predicated region
        $region53: #{tpu_custom_call.1} parent=51 // pred_check
          %p300 = pneg %p47
        $region54: #{tpu_custom_call.1} parent=51 // pred_check_branch
          %302 = sbr.rel (%p300) target = $region56
        $region55: #{tpu_custom_call.1} parent=51 // pred_region
          %303 = dma.done %s296, 768
        $region56: #{tpu_custom_call.1} parent=51 // pred_fallthru
          _
        // Predicated region
        $region57: #{tpu_custom_call.1} parent=51 // pred_check
          %p304 = pneg %p68
        $region58: #{tpu_custom_call.1} parent=51 // pred_check_branch
          %306 = sbr.rel (%p304) target = $region60
        $region59: #{tpu_custom_call.1} parent=51 // pred_region
          %307 = dma.done [#allocation5], 16
        $region60: #{tpu_custom_call.1} parent=51 // pred_fallthru
          _
        %308 = sfence
        %s309 = sand.u32 %s34, 1
        %s310 = scalar_lea.sflag [#allocation3], %s309
        %s311 = sand.u32 %s34, 1
        %s312 = smul.addr %s311, 48
        %s313 = scalar_lea.vmem [#allocation2], %s312
        %p314 = pneg %p47
        %p315 = pneg %p44
        %p316 = pneg %p68
        %p317 = pneg %p65
        %p318 = pneg %p89
        %p319 = pneg %p86
        %p320 = pneg %p110
        %p321 = pneg %p107
        %p322 = pneg %p131
        %p323 = pneg %p128
        %p324 = pneg %p152
        %p325 = pneg %p149
        %p326 = pneg %p173
        %p327 = pneg %p170
        %p328 = pneg %p194
        %p329 = pneg %p191
        %p330 = pneg %p220
        %p331 = pneg %p217
        %s332 = sand.u32 %s207, 1
        %s333 = scalar_lea.sflag [#allocation4], %s332
        %s334 = sand.u32 %s207, 1
        %s335 = smul.addr %s334, 8
        %s336 = scalar_lea.vmem [#allocation7], %s335
        %v337 = vld [vmem:[%s299] sm:$0xff]
        %s338 = sld [smem:[#allocation6]]
        %v339 = vstv %s338
        %v340 = vmul.f32 %v337, %v339
        %s341 = scalar_lea.vmem %s299, 8 [#allocation2]
        %v342 = vld [vmem:[%s341] sm:$0xff]
        %s343 = sld [smem:[#allocation6 + $0x1]]
        %v344 = vstv %s343
        %v345 = vmul.f32 %v342, %v344
        %v346 = vadd.f32 %v340, %v345
        %s347 = scalar_lea.vmem %s299, 16 [#allocation2]
        %v348 = vld [vmem:[%s347] sm:$0xff]
        %s349 = sld [smem:[#allocation6 + $0x2]]
        %v350 = vstv %s349
        %v351 = vmul.f32 %v348, %v350
        %v352 = vadd.f32 %v346, %v351
        %s353 = scalar_lea.vmem %s299, 24 [#allocation2]
        %v354 = vld [vmem:[%s353] sm:$0xff]
        %s355 = sld [smem:[#allocation6 + $0x3]]
        %v356 = vstv %s355
        %v357 = vmul.f32 %v354, %v356
        %v358 = vadd.f32 %v352, %v357
        %s359 = scalar_lea.vmem %s299, 32 [#allocation2]
        %v360 = vld [vmem:[%s359] sm:$0xff]
        %s361 = sld [smem:[#allocation6 + $0x4]]
        %v362 = vstv %s361
        %v363 = vmul.f32 %v360, %v362
        %v364 = vadd.f32 %v358, %v363
        %vm365 = vcmask 334848
        %v366 = vsel %vm365, %v364, 0.0
        %367 = vadd.xlane.f32.xlu0 %v366
        %v368 = vpop.xlane.xlu0 %367
        %v369 = vrcp.pop 41.0
        %v370 = vmul.f32 %v368, %v369
        %v371 = vsub.f32 %v364, %v370
        %v372 = vmul.f32 %v371, %v371
        %v373 = vsel %vm365, %v372, 0.0
        %374 = vadd.xlane.f32.xlu0 %v373
        %v375 = vpop.xlane.xlu0 %374
        %v376 = vmul.f32 %v375, %v369
        %v377 = vadd.f32 %v376, 1e-05
        %v378 = vrsqrt.pop %v377
        %v379 = vmul.f32 %v371, %v378
        %v380 = vld [vmem:[%s2] sm:$0x1]
        %v382 = vlaneseq
        %v383 = vshrl.u32 %v382, 7
        %v384 = vsub.s32 0, %v383
        %v385 = vrot.slane %v380, %v384
        %v387 = vmul.f32 %v379, %v385
        %v388 = vld [vmem:[%s3] sm:$0x1]
        %v390 = vlaneseq
        %v391 = vshrl.u32 %v390, 7
        %v392 = vsub.s32 0, %v391
        %v393 = vrot.slane %v388, %v392
        %v395 = vadd.f32 %v387, %v393
        %v396 = vld [vmem:[%s4] sm:$0xff]
        %v397 = vld [vmem:[%s4 + $0x8] sm:$0xff]
        %v398 = vld [vmem:[%s4 + $0x10] sm:$0xff]
        %v399 = vld [vmem:[%s4 + $0x18] sm:$0xff]
        %v400 = vld [vmem:[%s4 + $0x20] sm:$0xff]
        %v401 = vld [vmem:[%s4 + $0x28] sm:$0x1]
        %v402 = vld [vmem:[%s5] sm:$0x1]
        %v404 = vlaneseq
        %v405 = vshrl.u32 %v404, 7
        %v406 = vsub.s32 0, %v405
        %v407 = vrot.slane %v402, %v406
        %v410 = vsel %vm365, %v395, 0
        %vm412 = vcmask 1040384
        %v414 = vsel %vm412, %v401, 0
        %416 = vmatprep.subr.mxu0 0.0
        %417 = vmatpush1.msra.mxu0 0.0
        %418 = vmatprep.subr.mxu0 0.0
        %419 = vmatpush1.msra.mxu0 0.0
        %420 = vmatprep.subr.mxu0 0.0
        %421 = vmatpush1.msra.mxu0 0.0
        %422 = vmatprep.subr.mxu0 0.0
        %423 = vmatpush1.msra.mxu0 0.0
        %424 = vmatprep.subr.mxu0 0.0
        %425 = vmatpush1.msra.mxu0 0.0
        %426 = vmatprep.subr.mxu0 0.0
        %427 = vmatpush1.msra.mxu0 0.0
        %428 = vmatprep.subr.mxu0 0.0
        %429 = vmatpush1.msra.mxu0 0.0
        %430 = vmatprep.subr.mxu0 0.0
        %431 = vmatpush1.msra.mxu0 0.0
        %432 = vmatprep.subr.mxu0 0.0
        %433 = vmatpush1.msra.mxu0 0.0
        %434 = vmatprep.subr.mxu0 0.0
        %435 = vmatpush1.msra.mxu0 0.0
        %436 = vmatprep.subr.mxu0 0.0
        %437 = vmatpush1.msra.mxu0 %v414
        %438 = vmatprep.subr.mxu0 0.0
        %439 = vmatpush1.msra.mxu0 %v400
        %440 = vmatprep.subr.mxu0 0.0
        %441 = vmatpush1.msra.mxu0 %v399
        %442 = vmatprep.subr.mxu0 0.0
        %443 = vmatpush1.msra.mxu0 %v398
        %444 = vmatprep.subr.mxu0 0.0
        %445 = vmatpush1.msra.mxu0 %v397
        %446 = vmatprep.subr.mxu0 0.0
        %447 = vmatpush1.msra.mxu0 %v396
        %448 = vmatprep.subr.mxu0 0.0
        %449 = vmatpush2.msra.mxu0 0.0
        %450 = vmatprep.subr.mxu0 0.0
        %451 = vmatpush2.msra.mxu0 0.0
        %452 = vmatprep.subr.mxu0 0.0
        %453 = vmatpush2.msra.mxu0 0.0
        %454 = vmatprep.subr.mxu0 0.0
        %455 = vmatpush2.msra.mxu0 0.0
        %456 = vmatprep.subr.mxu0 0.0
        %457 = vmatpush2.msra.mxu0 0.0
        %458 = vmatprep.subr.mxu0 0.0
        %459 = vmatpush2.msra.mxu0 0.0
        %460 = vmatprep.subr.mxu0 0.0
        %461 = vmatpush2.msra.mxu0 0.0
        %462 = vmatprep.subr.mxu0 0.0
        %463 = vmatpush2.msra.mxu0 0.0
        %464 = vmatprep.subr.mxu0 0.0
        %465 = vmatpush2.msra.mxu0 0.0
        %466 = vmatprep.subr.mxu0 0.0
        %467 = vmatpush2.msra.mxu0 0.0
        %468 = vmatprep.subr.mxu0 0.0
        %469 = vmatpush2.msra.mxu0 0.0
        %470 = vmatprep.subr.mxu0 0.0
        %471 = vmatpush2.msra.mxu0 0.0
        %472 = vmatprep.subr.mxu0 0.0
        %473 = vmatpush2.msra.mxu0 0.0
        %474 = vmatprep.subr.mxu0 0.0
        %475 = vmatpush2.msra.mxu0 0.0
        %476 = vmatprep.subr.mxu0 0.0
        %477 = vmatpush2.msra.mxu0 0.0
        %478 = vmatprep.subr.mxu0 0.0
        %479 = vmatpush2.msra.mxu0 0.0
        %480 = vmatprep.mubr.f32.mxu0 0.0
        %481 = vmatmul.mubr.f32.gmra.mxu0 %v410
        %v482 = vpop.f32.mrf.mxu0
        %v483 = vadd.f32 %v407, %v482
        %v484 = vpop.f32.mrf.mxu0
        %485 = vdwg.mxu0
        %v486 = vmax.f32 %v483, 0.0
        %v487 = vld [vmem:[%s6] sm:$0xff]
        %v488 = vld [vmem:[%s6 + $0x8] sm:$0xff]
        %v489 = vld [vmem:[%s6 + $0x10] sm:$0xff]
        %v490 = vld [vmem:[%s6 + $0x18] sm:$0x3f]
        %v491 = vld [vmem:[%s7] sm:$0x1]
        %v493 = vlaneseq
        %v494 = vshrl.u32 %v493, 7
        %v495 = vsub.s32 0, %v494
        %v496 = vrot.slane %v491, %v495
        %vm498 = vcmask 244736
        %v500 = vsel %vm498, %v486, 0
        %vm502 = vcmask 1045504
        %v504 = vsel %vm502, %v490, 0
        %506 = vmatprep.subr.mxu0 0.0
        %507 = vmatpush1.msra.mxu0 0.0
        %508 = vmatprep.subr.mxu0 0.0
        %509 = vmatpush1.msra.mxu0 0.0
        %510 = vmatprep.subr.mxu0 0.0
        %511 = vmatpush1.msra.mxu0 0.0
        %512 = vmatprep.subr.mxu0 0.0
        %513 = vmatpush1.msra.mxu0 0.0
        %514 = vmatprep.subr.mxu0 0.0
        %515 = vmatpush1.msra.mxu0 0.0
        %516 = vmatprep.subr.mxu0 0.0
        %517 = vmatpush1.msra.mxu0 0.0
        %518 = vmatprep.subr.mxu0 0.0
        %519 = vmatpush1.msra.mxu0 0.0
        %520 = vmatprep.subr.mxu0 0.0
        %521 = vmatpush1.msra.mxu0 0.0
        %522 = vmatprep.subr.mxu0 0.0
        %523 = vmatpush1.msra.mxu0 0.0
        %524 = vmatprep.subr.mxu0 0.0
        %525 = vmatpush1.msra.mxu0 0.0
        %526 = vmatprep.subr.mxu0 0.0
        %527 = vmatpush1.msra.mxu0 0.0
        %528 = vmatprep.subr.mxu0 0.0
        %529 = vmatpush1.msra.mxu0 0.0
        %530 = vmatprep.subr.mxu0 0.0
        %531 = vmatpush1.msra.mxu0 %v504
        %532 = vmatprep.subr.mxu0 0.0
        %533 = vmatpush1.msra.mxu0 %v489
        %534 = vmatprep.subr.mxu0 0.0
        %535 = vmatpush1.msra.mxu0 %v488
        %536 = vmatprep.subr.mxu0 0.0
        %537 = vmatpush1.msra.mxu0 %v487
        %538 = vmatprep.subr.mxu0 0.0
        %539 = vmatpush2.msra.mxu0 0.0
        %540 = vmatprep.subr.mxu0 0.0
        %541 = vmatpush2.msra.mxu0 0.0
        %542 = vmatprep.subr.mxu0 0.0
        %543 = vmatpush2.msra.mxu0 0.0
        %544 = vmatprep.subr.mxu0 0.0
        %545 = vmatpush2.msra.mxu0 0.0
        %546 = vmatprep.subr.mxu0 0.0
        %547 = vmatpush2.msra.mxu0 0.0
        %548 = vmatprep.subr.mxu0 0.0
        %549 = vmatpush2.msra.mxu0 0.0
        %550 = vmatprep.subr.mxu0 0.0
        %551 = vmatpush2.msra.mxu0 0.0
        %552 = vmatprep.subr.mxu0 0.0
        %553 = vmatpush2.msra.mxu0 0.0
        %554 = vmatprep.subr.mxu0 0.0
        %555 = vmatpush2.msra.mxu0 0.0
        %556 = vmatprep.subr.mxu0 0.0
        %557 = vmatpush2.msra.mxu0 0.0
        %558 = vmatprep.subr.mxu0 0.0
        %559 = vmatpush2.msra.mxu0 0.0
        %560 = vmatprep.subr.mxu0 0.0
        %561 = vmatpush2.msra.mxu0 0.0
        %562 = vmatprep.subr.mxu0 0.0
        %563 = vmatpush2.msra.mxu0 0.0
        %564 = vmatprep.subr.mxu0 0.0
        %565 = vmatpush2.msra.mxu0 0.0
        %566 = vmatprep.subr.mxu0 0.0
        %567 = vmatpush2.msra.mxu0 0.0
        %568 = vmatprep.subr.mxu0 0.0
        %569 = vmatpush2.msra.mxu0 0.0
        %570 = vmatprep.mubr.f32.mxu0 0.0
        %571 = vmatmul.mubr.f32.gmra.mxu0 %v500
        %v572 = vpop.f32.mrf.mxu0
        %v573 = vadd.f32 %v496, %v572
        %v574 = vpop.f32.mrf.mxu0
        %575 = vdwg.mxu0
        %s576 = sld [smem:[#allocation6 + $0xa]]
        %s577 = scalar_lea.vmem %s299, 40 [#allocation2]
        %v578 = vld [vmem:[%s577] sm:$0xff]
        %v579 = vstv %s576
        %v580 = vmul.f32 %v573, %v579
        %v581 = vadd.f32 %v578, %v580
        %582 = vst.msk [vmem:[%s336] sm:$0xff] %vm365, %v581
        %s583 = sand.u32 %s207, 1
        %s584 = scalar_lea.sflag [#allocation4], %s583
        %s585 = sand.u32 %s207, 1
        %s586 = smul.addr %s585, 8
        %s587 = scalar_lea.vmem [#allocation7], %s586
        // Predicated region
        $region61: #{tpu_custom_call.1} parent=51 // pred_check
          %p588 = pneg %p217
        $region62: #{tpu_custom_call.1} parent=51 // pred_check_branch
          %590 = sbr.rel (%p588) target = $region64
        $region63: #{tpu_custom_call.1} parent=51 // pred_region
          %s592 = ssub.s32 128, 128
          %593 = vsyncadd %s584, %s592
          %s594 = sadd.s32 %s26, 10
          %s595 = smul.addr %s594, 128
          %s596 = scalar_lea.hbm %s8, %s595
          %s598 = sshll.u32 %s587, 4
          %s599 = int_to_ptr.vmem [resolvable:$true] %s598
          %601 = dma.vmem_to_hbm [thread:$0]  %s599, 128, %s596, %s584
        $region64: #{tpu_custom_call.1} parent=51 // pred_fallthru
          _
      $region52: #{tpu_custom_call.1} parent=5 // pred_fallthru
        _
      %p602 = scmp.le.s32.totalorder 2, %s21
      // Predicated region
      $region65: #{tpu_custom_call.1} parent=5 // pred_check
        %p603 = pneg %p602
      $region66: #{tpu_custom_call.1} parent=5 // pred_check_branch
        %605 = sbr.rel (%p603) target = $region68
      $region67: #{tpu_custom_call.1} parent=5 // pred_region
        %s606 = ssub.s32 %s21, 2
        // Predicated region
        $region69: #{tpu_custom_call.1} parent=67 // pred_check
          %p607 = pneg %p223
        $region70: #{tpu_custom_call.1} parent=67 // pred_check_branch
          %609 = sbr.rel (%p607) target = $region72
        $region71: #{tpu_custom_call.1} parent=67 // pred_region
          %s610 = sand.u32 %s208, 1
          %s611 = scalar_lea.sflag [#allocation4], %s610
          %s612 = sand.u32 %s208, 1
          %s613 = smul.addr %s612, 8
          %s614 = scalar_lea.vmem [#allocation7], %s613
          %615 = dma.done %s611, 128
        $region72: #{tpu_custom_call.1} parent=67 // pred_fallthru
          _
      $region68: #{tpu_custom_call.1} parent=5 // pred_fallthru
        _
    $region6: #{tpu_custom_call.1} parent=1 // loop_footer
      %s25 = sadd.s32 1, %s21
    $region7: #{tpu_custom_call.1} parent=1 // loop_footer_branch
      %20 = sbr.rel target = $region3
    $region8: #{tpu_custom_call.1} parent=1 // loop_exit
      _
    %616 = vsyncpa [#allocation3], 1
    %s617 = scalar_lea.sflag [#allocation3], 1
    %618 = vsyncpa %s617, 1
    %619 = vsyncpa [#allocation4], 1
    %s620 = scalar_lea.sflag [#allocation4], 1
    %621 = vsyncpa %s620, 1
    %622 = vsyncpa [#allocation5], 1
    %s623 = scalar_lea.sflag [#allocation5], 1
    %624 = vsyncpa %s623, 1

</llo_original>
